<compile_context>
chip_gen: v7x
topology: tpu7x:2x2x1
jax: 0.10.0
libtpu: 0.0.40
codegen_flags: <defaults>
</compile_context>

<pallas_src>
import jax
import jax.numpy as jnp
from jax.experimental import pallas as pl
from jax.experimental.pallas import tpu as pltpu


def _round_up(x: int, m: int) -> int:
    return ((x + m - 1) // m) * m


def _largest_divisor_leq(n: int, cap: int) -> int:
    cap = max(1, min(n, cap))
    while n % cap:
        cap -= 1
    return cap


def _vmem_capacity_bytes() -> int:
    try:
        return int(pltpu.get_tpu_info().vmem_capacity_bytes)
    except Exception:
        return 64 << 20  # assume the most restrictive generation (v7x)


# --------------------------- kernels ---------------------------

def _bmm_single_k_kernel(a_ref, b_ref, o_ref):
    # Whole K fits in one tile: one pass per output tile, no accumulator.
    o_ref[...] = jnp.einsum(
        "bmk,bkn->bmn", a_ref[...], b_ref[...],
        preferred_element_type=jnp.float32,
    ).astype(o_ref.dtype)


def _bmm_accum_f32_kernel(a_ref, b_ref, o_ref):
    # f32 output: accumulate directly into the VMEM-resident output tile
    # (same output block across the k axis => it stays resident in VMEM).
    @pl.when(pl.program_id(3) == 0)
    def _init():
        o_ref[...] = jnp.zeros_like(o_ref)

    o_ref[...] += jnp.einsum(
        "bmk,bkn->bmn", a_ref[...], b_ref[...],
        preferred_element_type=jnp.float32,
    )


def _bmm_accum_scratch_kernel(a_ref, b_ref, o_ref, acc_ref):
    # Narrow output dtype: accumulate in f32 scratch, cast on the last K step.
    k = pl.program_id(3)

    @pl.when(k == 0)
    def _init():
        acc_ref[...] = jnp.zeros_like(acc_ref)

    acc_ref[...] += jnp.einsum(
        "bmk,bkn->bmn", a_ref[...], b_ref[...],
        preferred_element_type=jnp.float32,
    )

    @pl.when(k == pl.num_programs(3) - 1)
    def _finalize():
        o_ref[...] = acc_ref[...].astype(o_ref.dtype)


# --------------------------- config ---------------------------

def _pick_config(B, M, K, N, in_itemsize, out_itemsize):
    vmem_cap = _vmem_capacity_bytes()
    if vmem_cap >= (100 << 20):          # v5e / v6e: 128 MiB physical VMEM
        budget = 80 << 20
        vmem_limit = 100 << 20
        tm_cap, tn_cap, tk_cap = 512, 1024, 2048
    else:                                 # v7x: 64 MiB physical VMEM
        budget = 40 << 20
        vmem_limit = 48 << 20
        tm_cap, tn_cap, tk_cap = 512, 512, 1024

    # M/N tiles: full dim (always legal, no padding, no edge block) when it
    # fits, otherwise a large (8,128)-aligned tile with a ragged edge block.
    tm = M if M <= tm_cap else tm_cap
    tn = N if N <= tn_cap else tn_cap

    # K tile: collapse the K grid axis whenever K fits a single tile; a ragged
    # K edge would corrupt the accumulation, so otherwise zero-pad K to a
    # multiple of tk (preferring a tk that divides round_up(K, 128)).
    if K <= tk_cap:
        tk, Kp = K, K
    else:
        Kp = _round_up(K, 128)
        tk = None
        for cand in range(tk_cap, 0, -128):
            if Kp % cand == 0:
                tk = cand
                break
        if tk is None:
            tk = tk_cap
            Kp = _round_up(K, tk_cap)

    # Small-M path: pack several batch elements per grid step so each MXU
    # pass / grid step does a reasonable amount of work.
    bb = 1
    if M < 128 and B > 1:
        bb = _largest_divisor_leq(B, max(1, 256 // _round_up(M, 8)))

    def _need(bb_):
        a = bb_ * tm * tk * in_itemsize
        b = bb_ * tk * tn * in_itemsize
        o = bb_ * tm * tn * out_itemsize
        acc = bb_ * tm * tn * 4
        return 2 * (a + b + o) + acc          # double-buffered tiles + acc

    while bb > 1 and _need(bb) > budget:
        bb = _largest_divisor_leq(B, max(1, bb // 2))

    return bb, tm, tn, tk, Kp, vmem_limit


# --------------------------- wrapper ---------------------------

@jax.jit
def pallas_matmul(x1, x2):
    """Batched matmul: x1 (B, M, K) @ x2 (B, K, N) -> (B, M, N)."""
    squeeze_batch = False
    if x1.ndim == 2 and x2.ndim == 2:
        x1, x2 = x1[None], x2[None]
        squeeze_batch = True

    B, M, K = x1.shape
    B2, K2, N = x2.shape
    assert B == B2 and K == K2, "shape mismatch"

    out_dtype = jnp.result_type(x1.dtype, x2.dtype)
    in_itemsize = max(jnp.dtype(x1.dtype).itemsize, jnp.dtype(x2.dtype).itemsize)
    out_itemsize = jnp.dtype(out_dtype).itemsize

    bb, tm, tn, tk, Kp, vmem_limit = _pick_config(
        B, M, K, N, in_itemsize, out_itemsize)

    # Zero-pad along K only (when needed). Ragged M/N edges are handled by
    # Pallas: garbage edge reads only feed output rows/lanes that are dropped.
    if Kp != K:
        x1 = jnp.pad(x1, ((0, 0), (0, 0), (0, Kp - K)))
        x2 = jnp.pad(x2, ((0, 0), (0, Kp - K), (0, 0)))

    nk = Kp // tk
    grid = (B // bb, pl.cdiv(M, tm), pl.cdiv(N, tn), nk)

    if nk == 1:
        kernel = _bmm_single_k_kernel
        scratch = []
    elif out_dtype == jnp.float32:
        kernel = _bmm_accum_f32_kernel
        scratch = []
    else:
        kernel = _bmm_accum_scratch_kernel
        scratch = [pltpu.VMEM((bb, tm, tn), jnp.float32)]

    cost = pl.CostEstimate(
        flops=2 * B * M * N * Kp,
        transcendentals=0,
        bytes_accessed=int(
            x1.size * jnp.dtype(x1.dtype).itemsize
            + x2.size * jnp.dtype(x2.dtype).itemsize
            + B * M * N * out_itemsize
        ),
    )

    out = pl.pallas_call(
        kernel,
        out_shape=jax.ShapeDtypeStruct((B, M, N), out_dtype),
        grid_spec=pltpu.PrefetchScalarGridSpec(
            num_scalar_prefetch=0,
            grid=grid,
            in_specs=[
                pl.BlockSpec((bb, tm, tk), lambda b, i, j, k: (b, i, k)),
                pl.BlockSpec((bb, tk, tn), lambda b, i, j, k: (b, k, j)),
            ],
            out_specs=pl.BlockSpec((bb, tm, tn), lambda b, i, j, k: (b, i, j)),
            scratch_shapes=scratch,
        ),
        compiler_params=pltpu.CompilerParams(
            dimension_semantics=("parallel", "parallel", "parallel", "arbitrary"),
            vmem_limit_bytes=int(vmem_limit),
        ),
        cost_estimate=cost,
    )(x1, x2)

    if squeeze_batch:
        out = out[0]
    return out


def _assert_close(out, ref, tol, tag):
    err = float(jnp.max(jnp.abs(out - ref)) / (jnp.max(jnp.abs(ref)) + 1e-12))
    assert err < tol, f"{tag}: max relative error {err} >= {tol}"


if __name__ == "__main__":
    key = jax.random.PRNGKey(0)
    k1, k2 = jax.random.split(key)

    # 1) Small attention-like shapes (small-M batched path, single K step).
    B, M, K, N = 2, 8, 32, 16
    input1 = jax.random.normal(k1, (B, M, K), dtype=jnp.float32)
    input2 = jax.random.normal(k2, (B, K, N), dtype=jnp.float32)
    out = jax.block_until_ready(pallas_matmul(input1, input2))
    assert out.shape == (B, M, N)
    _assert_close(out, jnp.matmul(input1, input2), 1e-4, "small")

    # 2) Non-aligned shapes that fit whole-dim tiles (no padding at all).
    Bl, Ml, Kl, Nl = 2, 200, 384, 160
    a = jax.random.normal(k1, (Bl, Ml, Kl), dtype=jnp.float32)
    b = jax.random.normal(k2, (Bl, Kl, Nl), dtype=jnp.float32)
    out2 = jax.block_until_ready(pallas_matmul(a, b))
    assert out2.shape == (Bl, Ml, Nl)
    _assert_close(out2, jnp.matmul(a, b), 1e-3, "mid")

    # 3) Ragged M edge block + K-only zero padding + multi-step K accumulation
    #    directly into the resident f32 output tile.
    Bm, Mm, Km, Nm = 2, 600, 2500, 300
    a3 = jax.random.normal(k1, (Bm, Mm, Km), dtype=jnp.float32)
    b3 = jax.random.normal(k2, (Bm, Km, Nm), dtype=jnp.float32)
    out3 = jax.block_until_ready(pallas_matmul(a3, b3))
    assert out3.shape == (Bm, Mm, Nm)
    _assert_close(out3, jnp.matmul(a3, b3), 1e-3, "ragged")

    # 4) bf16 inputs: batched small-M path + f32 scratch accumulator kernel.
    Bb, Mb, Kb, Nb = 2, 64, 2500, 256
    a4 = jax.random.normal(k1, (Bb, Mb, Kb), dtype=jnp.bfloat16)
    b4 = jax.random.normal(k2, (Bb, Kb, Nb), dtype=jnp.bfloat16)
    out4 = jax.block_until_ready(pallas_matmul(a4, b4))
    assert out4.shape == (Bb, Mb, Nb)
    _assert_close(out4.astype(jnp.float32),
                  jnp.matmul(a4, b4).astype(jnp.float32), 3e-2, "bf16")

    print("KERNEL_OK")
</pallas_src>

<mosaic_0001>
module attributes {stable_mosaic.version = 11 : i64} {
  func.func @_bmm_single_k_kernel(%arg0: i32, %arg1: i32, %arg2: i32, %arg3: i32, %arg4: memref<2x8x32xf32, #tpu.memory_space<vmem>>, %arg5: memref<2x32x16xf32, #tpu.memory_space<vmem>>, %arg6: memref<2x8x16xf32, #tpu.memory_space<vmem>>) attributes {dimension_semantics = [#tpu.dimension_semantics<parallel>, #tpu.dimension_semantics<parallel>, #tpu.dimension_semantics<parallel>, #tpu.dimension_semantics<arbitrary>], iteration_bounds = array<i64: 1, 1, 1, 1>, scalar_prefetch = 0 : i64, scratch_operands = 0 : i64, tpu.core_type = #tpu.core_type<tc>, window_params = [{transform_indices = @transform_0, window_bounds = array<i64: 2, 8, 32>}, {transform_indices = @transform_1, window_bounds = array<i64: 2, 32, 16>}, {transform_indices = @transform_2, window_bounds = array<i64: 2, 8, 16>}]} {
    %c0 = arith.constant 0 : index
    %c0_0 = arith.constant 0 : index
    %c0_1 = arith.constant 0 : index
    %0 = vector.load %arg4[%c0, %c0_0, %c0_1] : memref<2x8x32xf32, #tpu.memory_space<vmem>>, vector<2x8x32xf32>
    %c0_2 = arith.constant 0 : index
    %c0_3 = arith.constant 0 : index
    %c0_4 = arith.constant 0 : index
    %1 = vector.load %arg5[%c0_2, %c0_3, %c0_4] : memref<2x32x16xf32, #tpu.memory_space<vmem>>, vector<2x32x16xf32>
    "tpu.trace_start"() <{level = 10 : i32, message = "bmk,bkn->bmn"}> : () -> ()
    %cst = arith.constant dense<0.000000e+00> : vector<2x8x16xf32>
    %2 = tpu.matmul %0, %1, %cst {dimension_numbers = #tpu.dot_dimension_numbers<[2], [1], [1], [2], [0, 0, 0, 1, 1, 2], [0], [0]>} : vector<2x8x32xf32>, vector<2x32x16xf32>, vector<2x8x16xf32> -> vector<2x8x16xf32>
    "tpu.trace_stop"() : () -> ()
    %c0_5 = arith.constant 0 : index
    %c0_6 = arith.constant 0 : index
    %c0_7 = arith.constant 0 : index
    %3 = vector.load %arg6[%c0_5, %c0_6, %c0_7] : memref<2x8x16xf32, #tpu.memory_space<vmem>>, vector<2x8x16xf32>
    tpu.vector_store %arg6[%c0_5, %c0_6, %c0_7], %2 {strides = array<i32>} : memref<2x8x16xf32, #tpu.memory_space<vmem>>, vector<2x8x16xf32>,
    return
  }
  func.func @transform_0(%arg0: i32, %arg1: i32, %arg2: i32, %arg3: i32) -> (i32, i32, i32) {
    %c0_i32 = arith.constant 0 : i32
    return %arg0, %arg1, %arg3 : i32, i32, i32
  }
  func.func @transform_1(%arg0: i32, %arg1: i32, %arg2: i32, %arg3: i32) -> (i32, i32, i32) {
    %c0_i32 = arith.constant 0 : i32
    return %arg0, %arg3, %arg2 : i32, i32, i32
  }
  func.func @transform_2(%arg0: i32, %arg1: i32, %arg2: i32, %arg3: i32) -> (i32, i32, i32) {
    %c0_i32 = arith.constant 0 : i32
    return %arg0, %arg1, %arg2 : i32, i32, i32
  }
}

</mosaic_0001>

<llo_original>
// kernel: pallas_matmul.1
$region0: #{pallas_matmul.1}
  #allocation0 [shape = 'u32[]', space=smem, size = 0x4, offset = 0x4, fixed_abs, tag = 'smem constant byte address 0x4 - core index']
  #allocation1 [shape = 'u32[144,128]{1,0:T(1,128)}', space=vmem, size = 0x12000, scoped, tag = 'internal scratch']
  %s0 = inlined_call_operand.vmem [shape: f32[2,8,32], index: 0, kind: input, shape index: {}]
  %s1 = inlined_call_operand.vmem [shape: f32[2,32,16], index: 1, kind: input, shape index: {}]
  %s2 = inlined_call_operand.hbm [shape: f32[2,8,16], index: 2, kind: output, shape index: {}]
  %s3 = sld [smem:[#allocation0]]
  $region18: #{pallas_matmul.1} parent=0
    _
  %s5 = ssub.s32 1, %s3
  %s6 = scalar_select 0, %s5, %s3
  $region1: #{pallas_matmul.1} parent=0
    #allocation2 [shape = 'u8[8192]{0}', space=vmem, size = 0x2000, scoped, tag = 'output window, operand 0, single buffered']
    #allocation3 [shape = 's32[1]{0}', space=sflag, size = 0x4, scoped, tag = 'scoped memory for pallas_matmul.1']
    %7 = vsyncpa [#allocation3], 0
    // Predicated region
    $region2: #{pallas_matmul.1} parent=1 // pred_check
      _
    $region3: #{pallas_matmul.1} parent=1 // pred_check_branch
      %9 = sbr.rel (0) target = $region5
    $region4: #{pallas_matmul.1} parent=1 // pred_region
      _
    $region5: #{pallas_matmul.1} parent=1 // pred_fallthru
      _
    // Predicated region
    $region6: #{pallas_matmul.1} parent=1 // pred_check
      _
    $region7: #{pallas_matmul.1} parent=1 // pred_check_branch
      %11 = sbr.rel (0) target = $region9
    $region8: #{pallas_matmul.1} parent=1 // pred_region
      _
    $region9: #{pallas_matmul.1} parent=1 // pred_fallthru
      _
    %v12 = vld [vmem:[%s0] sm:$0xff]
    %v13 = vld [vmem:[%s0 + $0x8] sm:$0xff]
    %v14 = vld [vmem:[%s1] sm:$0xff]
    %v15 = vld [vmem:[%s1 + $0x8] sm:$0xff]
    %v16 = vld [vmem:[%s1 + $0x10] sm:$0xff]
    %v17 = vld [vmem:[%s1 + $0x18] sm:$0xff]
    %v18 = vld [vmem:[%s1 + $0x20] sm:$0xff]
    %v19 = vld [vmem:[%s1 + $0x28] sm:$0xff]
    %v20 = vld [vmem:[%s1 + $0x30] sm:$0xff]
    %v21 = vld [vmem:[%s1 + $0x38] sm:$0xff]
    %vm22 = vcmask 261120
    %v24 = vsel %vm22, %v12, 0
    %26 = vmatprep.subr.mxu0 0.0
    %27 = vmatpush1.msra.mxu0 %v14
    %28 = vmatprep.subr.mxu0 0.0
    %29 = vmatpush1.msra.mxu0 %v15
    %30 = vmatprep.subr.mxu0 0.0
    %31 = vmatpush1.msra.mxu0 %v16
    %32 = vmatprep.subr.mxu0 0.0
    %33 = vmatpush1.msra.mxu0 %v17
    %34 = vmatprep.subr.mxu0 0.0
    %35 = vmatpush1.msra.mxu0 0.0
    %36 = vmatprep.subr.mxu0 0.0
    %37 = vmatpush1.msra.mxu0 0.0
    %38 = vmatprep.subr.mxu0 0.0
    %39 = vmatpush1.msra.mxu0 0.0
    %40 = vmatprep.subr.mxu0 0.0
    %41 = vmatpush1.msra.mxu0 0.0
    %42 = vmatprep.subr.mxu0 0.0
    %43 = vmatpush1.msra.mxu0 0.0
    %44 = vmatprep.subr.mxu0 0.0
    %45 = vmatpush1.msra.mxu0 0.0
    %46 = vmatprep.subr.mxu0 0.0
    %47 = vmatpush1.msra.mxu0 0.0
    %48 = vmatprep.subr.mxu0 0.0
    %49 = vmatpush1.msra.mxu0 0.0
    %50 = vmatprep.subr.mxu0 0.0
    %51 = vmatpush1.msra.mxu0 0.0
    %52 = vmatprep.subr.mxu0 0.0
    %53 = vmatpush1.msra.mxu0 0.0
    %54 = vmatprep.subr.mxu0 0.0
    %55 = vmatpush1.msra.mxu0 0.0
    %56 = vmatprep.subr.mxu0 0.0
    %57 = vmatpush1.msra.mxu0 0.0
    %58 = vmatprep.subr.mxu0 0.0
    %59 = vmatpush1.msra.mxu0 0.0
    %60 = vmatprep.subr.mxu0 0.0
    %61 = vmatpush1.msra.mxu0 0.0
    %62 = vmatprep.subr.mxu0 0.0
    %63 = vmatpush1.msra.mxu0 0.0
    %64 = vmatprep.subr.mxu0 0.0
    %65 = vmatpush1.msra.mxu0 0.0
    %66 = vmatprep.subr.mxu0 0.0
    %67 = vmatpush1.msra.mxu0 0.0
    %68 = vmatprep.subr.mxu0 0.0
    %69 = vmatpush1.msra.mxu0 0.0
    %70 = vmatprep.subr.mxu0 0.0
    %71 = vmatpush1.msra.mxu0 0.0
    %72 = vmatprep.subr.mxu0 0.0
    %73 = vmatpush1.msra.mxu0 0.0
    %74 = vmatprep.subr.mxu0 0.0
    %75 = vmatpush1.msra.mxu0 0.0
    %76 = vmatprep.subr.mxu0 0.0
    %77 = vmatpush1.msra.mxu0 0.0
    %78 = vmatprep.subr.mxu0 0.0
    %79 = vmatpush1.msra.mxu0 0.0
    %80 = vmatprep.subr.mxu0 0.0
    %81 = vmatpush1.msra.mxu0 0.0
    %82 = vmatprep.subr.mxu0 0.0
    %83 = vmatpush1.msra.mxu0 0.0
    %84 = vmatprep.subr.mxu0 0.0
    %85 = vmatpush1.msra.mxu0 0.0
    %86 = vmatprep.subr.mxu0 0.0
    %87 = vmatpush1.msra.mxu0 0.0
    %88 = vmatprep.subr.mxu0 0.0
    %89 = vmatpush1.msra.mxu0 0.0
    %90 = vmatprep.mubr.f32.mxu0 0.0
    %91 = vmatmul.mubr.f32.gmra.mrb[0].mxu0 %v24
    %v92 = vpop.f32.mrb[0].mxu0
    %v93 = vadd.f32 0.0, %v92
    %v94 = vpop.f32.mrb[0].mxu0
    %95 = vdwg.mxu0
    %v97 = vsel %vm22, %v13, 0
    %99 = vmatprep.subr.mxu0 0.0
    %100 = vmatpush1.msra.mxu0 %v18
    %101 = vmatprep.subr.mxu0 0.0
    %102 = vmatpush1.msra.mxu0 %v19
    %103 = vmatprep.subr.mxu0 0.0
    %104 = vmatpush1.msra.mxu0 %v20
    %105 = vmatprep.subr.mxu0 0.0
    %106 = vmatpush1.msra.mxu0 %v21
    %107 = vmatprep.subr.mxu0 0.0
    %108 = vmatpush1.msra.mxu0 0.0
    %109 = vmatprep.subr.mxu0 0.0
    %110 = vmatpush1.msra.mxu0 0.0
    %111 = vmatprep.subr.mxu0 0.0
    %112 = vmatpush1.msra.mxu0 0.0
    %113 = vmatprep.subr.mxu0 0.0
    %114 = vmatpush1.msra.mxu0 0.0
    %115 = vmatprep.subr.mxu0 0.0
    %116 = vmatpush1.msra.mxu0 0.0
    %117 = vmatprep.subr.mxu0 0.0
    %118 = vmatpush1.msra.mxu0 0.0
    %119 = vmatprep.subr.mxu0 0.0
    %120 = vmatpush1.msra.mxu0 0.0
    %121 = vmatprep.subr.mxu0 0.0
    %122 = vmatpush1.msra.mxu0 0.0
    %123 = vmatprep.subr.mxu0 0.0
    %124 = vmatpush1.msra.mxu0 0.0
    %125 = vmatprep.subr.mxu0 0.0
    %126 = vmatpush1.msra.mxu0 0.0
    %127 = vmatprep.subr.mxu0 0.0
    %128 = vmatpush1.msra.mxu0 0.0
    %129 = vmatprep.subr.mxu0 0.0
    %130 = vmatpush1.msra.mxu0 0.0
    %131 = vmatprep.subr.mxu0 0.0
    %132 = vmatpush1.msra.mxu0 0.0
    %133 = vmatprep.subr.mxu0 0.0
    %134 = vmatpush1.msra.mxu0 0.0
    %135 = vmatprep.subr.mxu0 0.0
    %136 = vmatpush1.msra.mxu0 0.0
    %137 = vmatprep.subr.mxu0 0.0
    %138 = vmatpush1.msra.mxu0 0.0
    %139 = vmatprep.subr.mxu0 0.0
    %140 = vmatpush1.msra.mxu0 0.0
    %141 = vmatprep.subr.mxu0 0.0
    %142 = vmatpush1.msra.mxu0 0.0
    %143 = vmatprep.subr.mxu0 0.0
    %144 = vmatpush1.msra.mxu0 0.0
    %145 = vmatprep.subr.mxu0 0.0
    %146 = vmatpush1.msra.mxu0 0.0
    %147 = vmatprep.subr.mxu0 0.0
    %148 = vmatpush1.msra.mxu0 0.0
    %149 = vmatprep.subr.mxu0 0.0
    %150 = vmatpush1.msra.mxu0 0.0
    %151 = vmatprep.subr.mxu0 0.0
    %152 = vmatpush1.msra.mxu0 0.0
    %153 = vmatprep.subr.mxu0 0.0
    %154 = vmatpush1.msra.mxu0 0.0
    %155 = vmatprep.subr.mxu0 0.0
    %156 = vmatpush1.msra.mxu0 0.0
    %157 = vmatprep.subr.mxu0 0.0
    %158 = vmatpush1.msra.mxu0 0.0
    %159 = vmatprep.subr.mxu0 0.0
    %160 = vmatpush1.msra.mxu0 0.0
    %161 = vmatprep.subr.mxu0 0.0
    %162 = vmatpush1.msra.mxu0 0.0
    %163 = vmatprep.mubr.f32.mxu0 0.0
    %164 = vmatmul.mubr.f32.gmra.mrb[0].mxu0 %v97
    %v165 = vpop.f32.mrb[0].mxu0
    %v166 = vadd.f32 0.0, %v165
    %v167 = vpop.f32.mrb[0].mxu0
    %168 = vdwg.mxu0
    %vm169 = vcmask 130048
    %170 = vst.msk [vmem:[#allocation2] sm:$0xff] %vm169, %v93
    %171 = vst.msk [vmem:[#allocation2 + $0x8] sm:$0xff] %vm169, %v166
    // Predicated region
    $region10: #{pallas_matmul.1} parent=1 // pred_check
      _
    $region11: #{pallas_matmul.1} parent=1 // pred_check_branch
      %173 = sbr.rel (0) target = $region13
    $region12: #{pallas_matmul.1} parent=1 // pred_region
      %s175 = ssub.s32 256, 256
      %176 = vsyncadd [#allocation3], %s175
      %s177 = sshll.u32 [#allocation2], 4
      %s178 = int_to_ptr.vmem [resolvable:$true] %s177
      %183 = dma.vmem_to_hbm [thread:$0]  %s178, 256, %s2, [#allocation3], 128, 128, 8
    $region13: #{pallas_matmul.1} parent=1 // pred_fallthru
      _
    // Predicated region
    $region14: #{pallas_matmul.1} parent=1 // pred_check
      _
    $region15: #{pallas_matmul.1} parent=1 // pred_check_branch
      %185 = sbr.rel (0) target = $region17
    $region16: #{pallas_matmul.1} parent=1 // pred_region
      %186 = dma.done [#allocation3], 256
    $region17: #{pallas_matmul.1} parent=1 // pred_fallthru
      _
    %187 = vsyncpa [#allocation3], 1

</llo_original>
